<compile_context>
chip_gen: v5e
topology: v5e:2x2
jax: 0.10.0
libtpu: 0.0.40
codegen_flags: <defaults>
</compile_context>

<pallas_src>
import functools

import jax
import jax.numpy as jnp
from jax import lax
from jax.experimental import pallas as pl
from jax.experimental.pallas import tpu as pltpu

NEG_SLOPE = 0.2   # DGL GATConv default leaky_relu negative_slope
NEG_INF = -1e30
_LANE = 128


def _round_up(v, m):
    return ((v + m - 1) // m) * m


def _pick_vmem_limit():
    """Generation-aware VMEM scoped limit: ~96 MiB on 128 MiB parts, ~48 MiB on 64 MiB."""
    cap = 64 * 1024 * 1024
    try:
        info = pltpu.get_tpu_info()
        cap = int(getattr(info, "vmem_capacity_bytes", cap)) or cap
    except Exception:
        pass
    return 96 * 1024 * 1024 if cap >= 100 * 1024 * 1024 else 48 * 1024 * 1024


def gatconv_kernel(x_ref, bias_ref, w_ref, wl_ref, wr_ref, b_ref, o_ref, *,
                   num_heads, head_dim, out_width):
    # x_ref   : (M, Din)      bf16  M = graphs_per_block * N (batch folded into rows)
    # bias_ref: (M, M)        bf16  additive mask: 0 for edge, -1e30 for non-edge
    # w_ref   : (Din, HFp)    bf16  fc weight (lane-padded columns are zero)
    # wl_ref  : (H, HFp)      f32   row h = attn_l[h] scattered into head h's lanes
    # wr_ref  : (H, HFp)      f32   row h = attn_r[h] scattered into head h's lanes
    # b_ref   : (1, HFp)      f32   bias (lane-padded columns are zero)
    # o_ref   : (M, HFp)      f32   output, single lane-dense store
    x = x_ref[...]
    bias = bias_ref[...].astype(jnp.float32)                              # (M, M)

    # fc: one MXU matmul for every graph in this block (bf16 in, f32 accum).
    z = jnp.dot(x, w_ref[...], preferred_element_type=jnp.float32)        # (M, HFp)

    # Attention logits for all heads with two small matmuls, no transposes:
    #   el_rows[h, src] = attn_l[h] . z_h[src]   (lane-aligned row per head)
    #   er_cols[dst, h] = attn_r[h] . z_h[dst]   (sublane-aligned col per head)
    dn = (((1,), (1,)), ((), ()))
    el_rows = lax.dot_general(wl_ref[...], z, dn,
                              preferred_element_type=jnp.float32)          # (H, M)
    er_cols = lax.dot_general(z, wr_ref[...], dn,
                              preferred_element_type=jnp.float32)          # (M, H)

    z_bf = z.astype(jnp.bfloat16)                 # hoisted out of the head loop
    m_rows = x.shape[0]
    ones_col = jnp.ones((m_rows, 1), jnp.bfloat16)

    outs = []
    # num_heads is small & static; each head keeps only its (M, head_dim) result
    # live -- the (M, M) temporaries die at the aggregation dot below.
    for h in range(num_heads):
        lo = h * head_dim
        # e[dst, src] = leaky_relu(er[dst] + el[src]) + additive mask
        s = er_cols[:, h:h + 1] + el_rows[h:h + 1, :]                      # (M, M)
        e = jnp.maximum(s, NEG_SLOPE * s) + bias
        # masked entries are ~-1e30 below the row max -> exp underflows to 0.
        p = jnp.exp(e - jnp.max(e, axis=1, keepdims=True))                 # (M, M)

        # Aggregation with the softmax denominator folded into the matmul:
        #   p @ [z_h | 1] -> (M, head_dim + 1); last column is the row sum.
        zh1 = jnp.concatenate([z_bf[:, lo:lo + head_dim], ones_col], axis=-1)
        agg = jnp.dot(p.astype(jnp.bfloat16), zh1,
                      preferred_element_type=jnp.float32)                  # (M, F+1)
        denom = jnp.maximum(agg[:, head_dim:head_dim + 1], 1e-20)
        outs.append(agg[:, :head_dim] * pl.reciprocal(denom, approx=True))

    hf = num_heads * head_dim
    if out_width > hf:
        outs.append(jnp.zeros((m_rows, out_width - hf), jnp.float32))
    out = jnp.concatenate(outs, axis=-1) + b_ref[...]                      # (M, HFp)
    o_ref[...] = out.astype(o_ref.dtype)


def gat_conv(x, adj, w, al, ar, b, num_heads, head_dim,
             graphs_per_block=None, target_block_rows=256):
    """One GATConv layer.

    x:   (B, N, Din) -- Din may exceed w's true input dim (lane padding, zeros).
    Returns (B, N, HF_pad) with HF_pad = round_up(num_heads*head_dim, 128);
    columns beyond num_heads*head_dim are zero.
    """
    B, N, Din = x.shape
    in_dim, HF = w.shape
    assert HF == num_heads * head_dim and Din >= in_dim
    HF_pad = _round_up(HF, _LANE)

    # Cap block rows so the O(M^2) softmax temporaries stay small; keep a
    # divisor of B. (On v7x a >=2-step grid also lets both TensorCores work.)
    if graphs_per_block is None:
        g = max(1, min(B, target_block_rows // max(N, 1)))
        while B % g:
            g -= 1
        graphs_per_block = g
    if (graphs_per_block * N) % 8 and graphs_per_block != B:
        graphs_per_block = B                  # keep the (8, 128) block rule legal
    n_blocks = B // graphs_per_block
    M = graphs_per_block * N

    # Fold batch into rows; cast matmul operands to bf16; zero-pad to HF_pad.
    x2 = x.reshape(B * N, Din).astype(jnp.bfloat16)
    w_p = jnp.zeros((Din, HF_pad), jnp.bfloat16).at[:in_dim, :HF].set(
        w.astype(jnp.bfloat16))

    # Block-diagonal ADDITIVE mask: 0 for edges within a graph, -1e30 elsewhere.
    adj_mask = (adj != 0).astype(jnp.float32)                              # (N, N)
    blk_mask = jnp.kron(jnp.eye(graphs_per_block, dtype=jnp.float32), adj_mask)
    adj_bias = jnp.where(blk_mask > 0, 0.0, NEG_INF).astype(jnp.bfloat16)  # (M, M)

    # Scatter per-head attention vectors so one dot_general yields every head's
    # logits at once:  wl[h, h*F + f] = al[h, f]  (zeros elsewhere / in padding).
    eye_h = jnp.eye(num_heads, dtype=jnp.float32)
    wl = jnp.zeros((num_heads, HF_pad), jnp.float32).at[:, :HF].set(
        (eye_h[:, :, None] * al[None].astype(jnp.float32)).reshape(num_heads, HF))
    wr = jnp.zeros((num_heads, HF_pad), jnp.float32).at[:, :HF].set(
        (eye_h[:, :, None] * ar[None].astype(jnp.float32)).reshape(num_heads, HF))
    b2 = jnp.zeros((1, HF_pad), jnp.float32).at[0, :HF].set(b.astype(jnp.float32))

    flops = (2 * B * N * Din * HF_pad                         # fc
             + 2 * 2 * B * N * HF_pad * num_heads             # el / er logits
             + 2 * num_heads * n_blocks * M * M * (head_dim + 1))  # aggregation
    transcendentals = n_blocks * num_heads * M * M
    bytes_accessed = (x2.size * 2 + adj_bias.size * 2 + w_p.size * 2
                      + (wl.size + wr.size + b2.size) * 4 + B * N * HF_pad * 4)

    kernel = functools.partial(gatconv_kernel, num_heads=num_heads,
                               head_dim=head_dim, out_width=HF_pad)
    vmem_limit = _pick_vmem_limit()

    def _call(single_buffer_invariants):
        def inv_spec(shape):
            # Grid-invariant operands: single-buffer them (index_map is constant).
            if single_buffer_invariants:
                return pl.BlockSpec(shape, lambda i: (0, 0),
                                    pipeline_mode=pl.Buffered(buffer_count=1))
            return pl.BlockSpec(shape, lambda i: (0, 0))

        return pl.pallas_call(
            kernel,
            out_shape=jax.ShapeDtypeStruct((B * N, HF_pad), jnp.float32),
            grid_spec=pltpu.PrefetchScalarGridSpec(
                num_scalar_prefetch=0,
                grid=(n_blocks,),
                in_specs=[
                    pl.BlockSpec((M, Din), lambda i: (i, 0)),
                    inv_spec((M, M)),
                    inv_spec((Din, HF_pad)),
                    inv_spec((num_heads, HF_pad)),
                    inv_spec((num_heads, HF_pad)),
                    inv_spec((1, HF_pad)),
                ],
                out_specs=pl.BlockSpec((M, HF_pad), lambda i: (i, 0)),
            ),
            compiler_params=pltpu.CompilerParams(
                dimension_semantics=("parallel",),
                vmem_limit_bytes=vmem_limit),
            cost_estimate=pl.CostEstimate(
                flops=int(flops),
                transcendentals=int(transcendentals),
                bytes_accessed=int(bytes_accessed)),
        )(x2, adj_bias, w_p, wl, wr, b2)

    try:
        out2 = _call(True)
    except Exception:
        # pipeline_mode / Buffered(1) not supported in this jax build: fall back
        # to default double-buffering (correctness identical).
        out2 = _call(False)
    return out2.reshape(B, N, HF_pad)


def init_gat_params(key, in_feats, out_feats, num_heads, depth, mid_dim, mid_num_heads):
    """Deterministic synthetic params matching GATConv layer shapes."""
    params = []
    in_dim = in_feats
    cfgs = [(mid_dim, mid_num_heads)] * (depth - 1) + [(out_feats, num_heads)]
    for (od, nh) in cfgs:
        key, k1, k2, k3 = jax.random.split(key, 4)
        params.append(dict(
            w=jax.random.normal(k1, (in_dim, nh * od), jnp.float32) * 0.1,
            al=jax.random.normal(k2, (nh, od), jnp.float32) * 0.1,
            ar=jax.random.normal(k3, (nh, od), jnp.float32) * 0.1,
            b=0.01 * jnp.arange(nh * od, dtype=jnp.float32),
            num_heads=nh,
            head_dim=od,
        ))
        in_dim = nh * od
    return params


def gat_forward(node_feature, adj, params):
    """GAT.forward: concat of input features and every layer's flattened output."""
    outs = [node_feature]
    out = node_feature
    for p in params:
        hf = p["num_heads"] * p["head_dim"]
        out_pad = gat_conv(out, adj, p["w"], p["al"], p["ar"], p["b"],
                           p["num_heads"], p["head_dim"])
        outs.append(out_pad[..., :hf])
        out = out_pad           # feed lane-padded activations to the next layer
    # TODO(synk): write each layer directly into a preallocated concat slab via
    # input_output_aliases instead of wrapper-level jnp.concatenate.
    return jnp.concatenate(outs, axis=-1)


# ---------------- pure-JAX reference (for correctness check) ----------------

def gat_conv_ref(x, adj, w, al, ar, b, num_heads, head_dim):
    B, N, _ = x.shape
    HF = num_heads * head_dim
    z = jnp.einsum("bnd,df->bnf", x, w).reshape(B, N, num_heads, head_dim)
    el = jnp.einsum("bnhf,hf->bnh", z, al)
    er = jnp.einsum("bnhf,hf->bnh", z, ar)
    e = er[:, :, None, :] + el[:, None, :, :]                 # (B, dst, src, H)
    e = jnp.where(e > 0, e, NEG_SLOPE * e)
    mask = (adj != 0)[None, :, :, None]
    e = jnp.where(mask, e, -jnp.inf)
    alpha = jax.nn.softmax(e, axis=2)
    alpha = jnp.where(mask, alpha, 0.0)
    out = jnp.einsum("bdsh,bshf->bdhf", alpha, z)
    return out.reshape(B, N, HF) + b.reshape(1, 1, HF)


def gat_forward_ref(node_feature, adj, params):
    outs = [node_feature]
    out = node_feature
    for p in params:
        out = gat_conv_ref(out, adj, p["w"], p["al"], p["ar"], p["b"],
                           p["num_heads"], p["head_dim"])
        outs.append(out)
    return jnp.concatenate(outs, axis=-1)


if __name__ == "__main__":
    # Small shapes consistent with the module.
    B, N = 2, 8
    in_feats, out_feats, num_heads = 16, 8, 2
    depth, mid_dim, mid_num_heads = 2, 8, 2

    key = jax.random.PRNGKey(0)
    kx, kp = jax.random.split(key)
    x = jax.random.normal(kx, (B, N, in_feats), jnp.float32)

    # Ring graph with self-loops (every node has in-degree >= 1, as DGL requires).
    src = jnp.concatenate([jnp.arange(N), jnp.arange(N)])
    dst = jnp.concatenate([jnp.arange(N), (jnp.arange(N) + 1) % N])
    adj = jnp.zeros((N, N), jnp.float32).at[dst, src].set(1.0)  # adj[dst, src]

    params = init_gat_params(kp, in_feats, out_feats, num_heads, depth,
                             mid_dim, mid_num_heads)

    out = gat_forward(x, adj, params)
    jax.block_until_ready(out)

    expected_dim = (in_feats + (depth - 1) * mid_dim * mid_num_heads
                    + out_feats * num_heads)
    assert out.shape == (B, N, expected_dim), out.shape
    assert bool(jnp.all(jnp.isfinite(out)))

    # Loose tolerance: bf16 MXU inputs + approx reciprocal vs f32 reference.
    ref = gat_forward_ref(x, adj, params)
    max_err = float(jnp.max(jnp.abs(out - ref)))
    assert max_err < 0.1, max_err

    print("KERNEL_OK")
</pallas_src>

<mosaic_0001>
module attributes {stable_mosaic.version = 11 : i64} {
  func.func @gatconv_kernel(%arg0: i32, %arg1: memref<16x16xbf16, #tpu.memory_space<vmem>>, %arg2: memref<16x16xbf16, #tpu.memory_space<vmem>>, %arg3: memref<16x128xbf16, #tpu.memory_space<vmem>>, %arg4: memref<2x128xf32, #tpu.memory_space<vmem>>, %arg5: memref<2x128xf32, #tpu.memory_space<vmem>>, %arg6: memref<1x128xf32, #tpu.memory_space<vmem>>, %arg7: memref<16x128xf32, #tpu.memory_space<vmem>>) attributes {dimension_semantics = [#tpu.dimension_semantics<parallel>], iteration_bounds = array<i64: 1>, scalar_prefetch = 0 : i64, scratch_operands = 0 : i64, tpu.core_type = #tpu.core_type<tc>, window_params = [{transform_indices = @transform_0, window_bounds = array<i64: 16, 16>}, {pipeline_mode = #tpu.pipeline_mode<synchronous>, transform_indices = @transform_1, window_bounds = array<i64: 16, 16>}, {pipeline_mode = #tpu.pipeline_mode<synchronous>, transform_indices = @transform_2, window_bounds = array<i64: 16, 128>}, {pipeline_mode = #tpu.pipeline_mode<synchronous>, transform_indices = @transform_3, window_bounds = array<i64: 2, 128>}, {pipeline_mode = #tpu.pipeline_mode<synchronous>, transform_indices = @transform_4, window_bounds = array<i64: 2, 128>}, {pipeline_mode = #tpu.pipeline_mode<synchronous>, transform_indices = @transform_5, window_bounds = array<i64: 1, 128>}, {transform_indices = @transform_6, window_bounds = array<i64: 16, 128>}]} {
    %c0 = arith.constant 0 : index
    %c0_0 = arith.constant 0 : index
    %0 = vector.load %arg1[%c0, %c0_0] : memref<16x16xbf16, #tpu.memory_space<vmem>>, vector<16x16xbf16>
    %c0_1 = arith.constant 0 : index
    %c0_2 = arith.constant 0 : index
    %1 = vector.load %arg2[%c0_1, %c0_2] : memref<16x16xbf16, #tpu.memory_space<vmem>>, vector<16x16xbf16>
    %2 = arith.extf %1 : vector<16x16xbf16> to vector<16x16xf32>
    %c0_3 = arith.constant 0 : index
    %c0_4 = arith.constant 0 : index
    %3 = vector.load %arg3[%c0_3, %c0_4] : memref<16x128xbf16, #tpu.memory_space<vmem>>, vector<16x128xbf16>
    %cst = arith.constant dense<0.000000e+00> : vector<16x128xf32>
    %4 = tpu.matmul %0, %3, %cst {dimension_numbers = #tpu.dot_dimension_numbers<[1], [0], [0], [1], [0, 0, 1, 1], [], []>} : vector<16x16xbf16>, vector<16x128xbf16>, vector<16x128xf32> -> vector<16x128xf32>
    %c0_5 = arith.constant 0 : index
    %c0_6 = arith.constant 0 : index
    %5 = vector.load %arg4[%c0_5, %c0_6] : memref<2x128xf32, #tpu.memory_space<vmem>>, vector<2x128xf32>
    %cst_7 = arith.constant dense<0.000000e+00> : vector<2x16xf32>
    %6 = tpu.matmul %5, %4, %cst_7 {dimension_numbers = #tpu.dot_dimension_numbers<[1], [1], [0], [0], [0, 0, 1, 0], [], []>} : vector<2x128xf32>, vector<16x128xf32>, vector<2x16xf32> -> vector<2x16xf32>
    %c0_8 = arith.constant 0 : index
    %c0_9 = arith.constant 0 : index
    %7 = vector.load %arg5[%c0_8, %c0_9] : memref<2x128xf32, #tpu.memory_space<vmem>>, vector<2x128xf32>
    %cst_10 = arith.constant dense<0.000000e+00> : vector<16x2xf32>
    %8 = tpu.matmul %4, %7, %cst_10 {dimension_numbers = #tpu.dot_dimension_numbers<[1], [1], [0], [0], [0, 0, 1, 0], [], []>} : vector<16x128xf32>, vector<2x128xf32>, vector<16x2xf32> -> vector<16x2xf32>
    %9 = arith.truncf %4 : vector<16x128xf32> to vector<16x128xbf16>
    %cst_11 = arith.constant 1.000000e+00 : bf16
    %10 = vector.broadcast %cst_11 : bf16 to vector<16x1xbf16>
    %11 = vector.extract_strided_slice %8 {offsets = [0, 0], sizes = [16, 1], strides = [1, 1]} : vector<16x2xf32> to vector<16x1xf32>
    %12 = vector.extract_strided_slice %6 {offsets = [0, 0], sizes = [1, 16], strides = [1, 1]} : vector<2x16xf32> to vector<1x16xf32>
    %13 = vector.broadcast %11 : vector<16x1xf32> to vector<16x16xf32>
    %14 = vector.broadcast %12 : vector<1x16xf32> to vector<16x16xf32>
    %15 = arith.addf %13, %14 : vector<16x16xf32>
    %cst_12 = arith.constant 2.000000e-01 : f32
    %16 = vector.broadcast %cst_12 : f32 to vector<16x16xf32>
    %17 = arith.mulf %16, %15 : vector<16x16xf32>
    %18 = arith.maximumf %15, %17 : vector<16x16xf32>
    %19 = arith.addf %18, %2 : vector<16x16xf32>
    %cst_13 = arith.constant dense<0xFF800000> : vector<16xf32>
    %20 = vector.multi_reduction <maximumf>, %19, %cst_13 [1] : vector<16x16xf32> to vector<16xf32>
    %21 = vector.shape_cast %20 : vector<16xf32> to vector<16x1xf32>
    %22 = vector.broadcast %21 : vector<16x1xf32> to vector<16x16xf32>
    %23 = arith.subf %19, %22 : vector<16x16xf32>
    %24 = math.exp %23 : vector<16x16xf32>
    %25 = vector.extract_strided_slice %9 {offsets = [0, 0], sizes = [16, 8], strides = [1, 1]} : vector<16x128xbf16> to vector<16x8xbf16>
    %26 = tpu.concatenate %25, %10 in 1 : vector<16x8xbf16>, vector<16x1xbf16> -> vector<16x9xbf16>
    %27 = arith.truncf %24 : vector<16x16xf32> to vector<16x16xbf16>
    %cst_14 = arith.constant dense<0.000000e+00> : vector<16x9xf32>
    %28 = tpu.matmul %27, %26, %cst_14 {dimension_numbers = #tpu.dot_dimension_numbers<[1], [0], [0], [1], [0, 0, 1, 1], [], []>} : vector<16x16xbf16>, vector<16x9xbf16>, vector<16x9xf32> -> vector<16x9xf32>
    %29 = vector.extract_strided_slice %28 {offsets = [0, 8], sizes = [16, 1], strides = [1, 1]} : vector<16x9xf32> to vector<16x1xf32>
    %cst_15 = arith.constant 9.99999968E-21 : f32
    %30 = vector.broadcast %cst_15 : f32 to vector<16x1xf32>
    %31 = arith.maximumf %29, %30 : vector<16x1xf32>
    %32 = vector.extract_strided_slice %28 {offsets = [0, 0], sizes = [16, 8], strides = [1, 1]} : vector<16x9xf32> to vector<16x8xf32>
    %33 = tpu.reciprocal %31 {approx = true} : vector<16x1xf32> -> vector<16x1xf32>
    %34 = vector.broadcast %33 : vector<16x1xf32> to vector<16x8xf32>
    %35 = arith.mulf %32, %34 : vector<16x8xf32>
    %36 = vector.extract_strided_slice %8 {offsets = [0, 1], sizes = [16, 1], strides = [1, 1]} : vector<16x2xf32> to vector<16x1xf32>
    %37 = vector.extract_strided_slice %6 {offsets = [1, 0], sizes = [1, 16], strides = [1, 1]} : vector<2x16xf32> to vector<1x16xf32>
    %38 = vector.broadcast %36 : vector<16x1xf32> to vector<16x16xf32>
    %39 = vector.broadcast %37 : vector<1x16xf32> to vector<16x16xf32>
    %40 = arith.addf %38, %39 : vector<16x16xf32>
    %cst_16 = arith.constant 2.000000e-01 : f32
    %41 = vector.broadcast %cst_16 : f32 to vector<16x16xf32>
    %42 = arith.mulf %41, %40 : vector<16x16xf32>
    %43 = arith.maximumf %40, %42 : vector<16x16xf32>
    %44 = arith.addf %43, %2 : vector<16x16xf32>
    %cst_17 = arith.constant dense<0xFF800000> : vector<16xf32>
    %45 = vector.multi_reduction <maximumf>, %44, %cst_17 [1] : vector<16x16xf32> to vector<16xf32>
    %46 = vector.shape_cast %45 : vector<16xf32> to vector<16x1xf32>
    %47 = vector.broadcast %46 : vector<16x1xf32> to vector<16x16xf32>
    %48 = arith.subf %44, %47 : vector<16x16xf32>
    %49 = math.exp %48 : vector<16x16xf32>
    %50 = vector.extract_strided_slice %9 {offsets = [0, 8], sizes = [16, 8], strides = [1, 1]} : vector<16x128xbf16> to vector<16x8xbf16>
    %51 = tpu.concatenate %50, %10 in 1 : vector<16x8xbf16>, vector<16x1xbf16> -> vector<16x9xbf16>
    %52 = arith.truncf %49 : vector<16x16xf32> to vector<16x16xbf16>
    %cst_18 = arith.constant dense<0.000000e+00> : vector<16x9xf32>
    %53 = tpu.matmul %52, %51, %cst_18 {dimension_numbers = #tpu.dot_dimension_numbers<[1], [0], [0], [1], [0, 0, 1, 1], [], []>} : vector<16x16xbf16>, vector<16x9xbf16>, vector<16x9xf32> -> vector<16x9xf32>
    %54 = vector.extract_strided_slice %53 {offsets = [0, 8], sizes = [16, 1], strides = [1, 1]} : vector<16x9xf32> to vector<16x1xf32>
    %cst_19 = arith.constant 9.99999968E-21 : f32
    %55 = vector.broadcast %cst_19 : f32 to vector<16x1xf32>
    %56 = arith.maximumf %54, %55 : vector<16x1xf32>
    %57 = vector.extract_strided_slice %53 {offsets = [0, 0], sizes = [16, 8], strides = [1, 1]} : vector<16x9xf32> to vector<16x8xf32>
    %58 = tpu.reciprocal %56 {approx = true} : vector<16x1xf32> -> vector<16x1xf32>
    %59 = vector.broadcast %58 : vector<16x1xf32> to vector<16x8xf32>
    %60 = arith.mulf %57, %59 : vector<16x8xf32>
    %cst_20 = arith.constant 0.000000e+00 : f32
    %61 = vector.broadcast %cst_20 : f32 to vector<16x112xf32>
    %62 = tpu.concatenate %35, %60, %61 in 1 : vector<16x8xf32>, vector<16x8xf32>, vector<16x112xf32> -> vector<16x128xf32>
    %c0_21 = arith.constant 0 : index
    %c0_22 = arith.constant 0 : index
    %63 = vector.load %arg6[%c0_21, %c0_22] : memref<1x128xf32, #tpu.memory_space<vmem>>, vector<1x128xf32>
    %64 = vector.broadcast %63 : vector<1x128xf32> to vector<16x128xf32>
    %65 = arith.addf %62, %64 : vector<16x128xf32>
    %c0_23 = arith.constant 0 : index
    %c0_24 = arith.constant 0 : index
    %66 = vector.load %arg7[%c0_23, %c0_24] : memref<16x128xf32, #tpu.memory_space<vmem>>, vector<16x128xf32>
    tpu.vector_store %arg7[%c0_23, %c0_24], %65 {strides = array<i32>} : memref<16x128xf32, #tpu.memory_space<vmem>>, vector<16x128xf32>,
    return
  }
  func.func @transform_0(%arg0: i32) -> (i32, i32) {
    %c0_i32 = arith.constant 0 : i32
    %c0_i32_0 = arith.constant 0 : i32
    return %arg0, %c0_i32 : i32, i32
  }
  func.func @transform_1(%arg0: i32) -> (i32, i32) {
    %c0_i32 = arith.constant 0 : i32
    %c0_i32_0 = arith.constant 0 : i32
    %c0_i32_1 = arith.constant 0 : i32
    return %c0_i32, %c0_i32_0 : i32, i32
  }
  func.func @transform_2(%arg0: i32) -> (i32, i32) {
    %c0_i32 = arith.constant 0 : i32
    %c0_i32_0 = arith.constant 0 : i32
    %c0_i32_1 = arith.constant 0 : i32
    return %c0_i32, %c0_i32_0 : i32, i32
  }
  func.func @transform_3(%arg0: i32) -> (i32, i32) {
    %c0_i32 = arith.constant 0 : i32
    %c0_i32_0 = arith.constant 0 : i32
    %c0_i32_1 = arith.constant 0 : i32
    return %c0_i32, %c0_i32_0 : i32, i32
  }
  func.func @transform_4(%arg0: i32) -> (i32, i32) {
    %c0_i32 = arith.constant 0 : i32
    %c0_i32_0 = arith.constant 0 : i32
    %c0_i32_1 = arith.constant 0 : i32
    return %c0_i32, %c0_i32_0 : i32, i32
  }
  func.func @transform_5(%arg0: i32) -> (i32, i32) {
    %c0_i32 = arith.constant 0 : i32
    %c0_i32_0 = arith.constant 0 : i32
    %c0_i32_1 = arith.constant 0 : i32
    return %c0_i32, %c0_i32_0 : i32, i32
  }
  func.func @transform_6(%arg0: i32) -> (i32, i32) {
    %c0_i32 = arith.constant 0 : i32
    %c0_i32_0 = arith.constant 0 : i32
    return %arg0, %c0_i32 : i32, i32
  }
}

module attributes {stable_mosaic.version = 11 : i64} {
  func.func @gatconv_kernel(%arg0: i32, %arg1: memref<16x16xbf16, #tpu.memory_space<vmem>>, %arg2: memref<16x16xbf16, #tpu.memory_space<vmem>>, %arg3: memref<16x128xbf16, #tpu.memory_space<vmem>>, %arg4: memref<2x128xf32, #tpu.memory_space<vmem>>, %arg5: memref<2x128xf32, #tpu.memory_space<vmem>>, %arg6: memref<1x128xf32, #tpu.memory_space<vmem>>, %arg7: memref<16x128xf32, #tpu.memory_space<vmem>>) attributes {dimension_semantics = [#tpu.dimension_semantics<parallel>], iteration_bounds = array<i64: 1>, scalar_prefetch = 0 : i64, scratch_operands = 0 : i64, tpu.core_type = #tpu.core_type<tc>, window_params = [{transform_indices = @transform_0, window_bounds = array<i64: 16, 16>}, {pipeline_mode = #tpu.pipeline_mode<synchronous>, transform_indices = @transform_1, window_bounds = array<i64: 16, 16>}, {pipeline_mode = #tpu.pipeline_mode<synchronous>, transform_indices = @transform_2, window_bounds = array<i64: 16, 128>}, {pipeline_mode = #tpu.pipeline_mode<synchronous>, transform_indices = @transform_3, window_bounds = array<i64: 2, 128>}, {pipeline_mode = #tpu.pipeline_mode<synchronous>, transform_indices = @transform_4, window_bounds = array<i64: 2, 128>}, {pipeline_mode = #tpu.pipeline_mode<synchronous>, transform_indices = @transform_5, window_bounds = array<i64: 1, 128>}, {transform_indices = @transform_6, window_bounds = array<i64: 16, 128>}]} {
    %c0 = arith.constant 0 : index
    %c0_0 = arith.constant 0 : index
    %0 = vector.load %arg1[%c0, %c0_0] : memref<16x16xbf16, #tpu.memory_space<vmem>>, vector<16x16xbf16>
    %c0_1 = arith.constant 0 : index
    %c0_2 = arith.constant 0 : index
    %1 = vector.load %arg2[%c0_1, %c0_2] : memref<16x16xbf16, #tpu.memory_space<vmem>>, vector<16x16xbf16>
    %2 = arith.extf %1 : vector<16x16xbf16> to vector<16x16xf32>
    %c0_3 = arith.constant 0 : index
    %c0_4 = arith.constant 0 : index
    %3 = vector.load %arg3[%c0_3, %c0_4] : memref<16x128xbf16, #tpu.memory_space<vmem>>, vector<16x128xbf16>
    %cst = arith.constant dense<0.000000e+00> : vector<16x128xf32>
    %4 = tpu.matmul %0, %3, %cst {dimension_numbers = #tpu.dot_dimension_numbers<[1], [0], [0], [1], [0, 0, 1, 1], [], []>} : vector<16x16xbf16>, vector<16x128xbf16>, vector<16x128xf32> -> vector<16x128xf32>
    %c0_5 = arith.constant 0 : index
    %c0_6 = arith.constant 0 : index
    %5 = vector.load %arg4[%c0_5, %c0_6] : memref<2x128xf32, #tpu.memory_space<vmem>>, vector<2x128xf32>
    %cst_7 = arith.constant dense<0.000000e+00> : vector<2x16xf32>
    %6 = tpu.matmul %5, %4, %cst_7 {dimension_numbers = #tpu.dot_dimension_numbers<[1], [1], [0], [0], [0, 0, 1, 0], [], []>} : vector<2x128xf32>, vector<16x128xf32>, vector<2x16xf32> -> vector<2x16xf32>
    %c0_8 = arith.constant 0 : index
    %c0_9 = arith.constant 0 : index
    %7 = vector.load %arg5[%c0_8, %c0_9] : memref<2x128xf32, #tpu.memory_space<vmem>>, vector<2x128xf32>
    %cst_10 = arith.constant dense<0.000000e+00> : vector<16x2xf32>
    %8 = tpu.matmul %4, %7, %cst_10 {dimension_numbers = #tpu.dot_dimension_numbers<[1], [1], [0], [0], [0, 0, 1, 0], [], []>} : vector<16x128xf32>, vector<2x128xf32>, vector<16x2xf32> -> vector<16x2xf32>
    %9 = arith.truncf %4 : vector<16x128xf32> to vector<16x128xbf16>
    %cst_11 = arith.constant 1.000000e+00 : bf16
    %10 = vector.broadcast %cst_11 : bf16 to vector<16x1xbf16>
    %11 = vector.extract_strided_slice %8 {offsets = [0, 0], sizes = [16, 1], strides = [1, 1]} : vector<16x2xf32> to vector<16x1xf32>
    %12 = vector.extract_strided_slice %6 {offsets = [0, 0], sizes = [1, 16], strides = [1, 1]} : vector<2x16xf32> to vector<1x16xf32>
    %13 = vector.broadcast %11 : vector<16x1xf32> to vector<16x16xf32>
    %14 = vector.broadcast %12 : vector<1x16xf32> to vector<16x16xf32>
    %15 = arith.addf %13, %14 : vector<16x16xf32>
    %cst_12 = arith.constant 2.000000e-01 : f32
    %16 = vector.broadcast %cst_12 : f32 to vector<16x16xf32>
    %17 = arith.mulf %16, %15 : vector<16x16xf32>
    %18 = arith.maximumf %15, %17 : vector<16x16xf32>
    %19 = arith.addf %18, %2 : vector<16x16xf32>
    %cst_13 = arith.constant dense<0xFF800000> : vector<16xf32>
    %20 = vector.multi_reduction <maximumf>, %19, %cst_13 [1] : vector<16x16xf32> to vector<16xf32>
    %21 = vector.shape_cast %20 : vector<16xf32> to vector<16x1xf32>
    %22 = vector.broadcast %21 : vector<16x1xf32> to vector<16x16xf32>
    %23 = arith.subf %19, %22 : vector<16x16xf32>
    %24 = math.exp %23 : vector<16x16xf32>
    %25 = vector.extract_strided_slice %9 {offsets = [0, 0], sizes = [16, 8], strides = [1, 1]} : vector<16x128xbf16> to vector<16x8xbf16>
    %26 = tpu.concatenate %25, %10 in 1 : vector<16x8xbf16>, vector<16x1xbf16> -> vector<16x9xbf16>
    %27 = arith.truncf %24 : vector<16x16xf32> to vector<16x16xbf16>
    %cst_14 = arith.constant dense<0.000000e+00> : vector<16x9xf32>
    %28 = tpu.matmul %27, %26, %cst_14 {dimension_numbers = #tpu.dot_dimension_numbers<[1], [0], [0], [1], [0, 0, 1, 1], [], []>} : vector<16x16xbf16>, vector<16x9xbf16>, vector<16x9xf32> -> vector<16x9xf32>
    %29 = vector.extract_strided_slice %28 {offsets = [0, 8], sizes = [16, 1], strides = [1, 1]} : vector<16x9xf32> to vector<16x1xf32>
    %cst_15 = arith.constant 9.99999968E-21 : f32
    %30 = vector.broadcast %cst_15 : f32 to vector<16x1xf32>
    %31 = arith.maximumf %29, %30 : vector<16x1xf32>
    %32 = vector.extract_strided_slice %28 {offsets = [0, 0], sizes = [16, 8], strides = [1, 1]} : vector<16x9xf32> to vector<16x8xf32>
    %33 = tpu.reciprocal %31 {approx = true} : vector<16x1xf32> -> vector<16x1xf32>
    %34 = vector.broadcast %33 : vector<16x1xf32> to vector<16x8xf32>
    %35 = arith.mulf %32, %34 : vector<16x8xf32>
    %36 = vector.extract_strided_slice %8 {offsets = [0, 1], sizes = [16, 1], strides = [1, 1]} : vector<16x2xf32> to vector<16x1xf32>
    %37 = vector.extract_strided_slice %6 {offsets = [1, 0], sizes = [1, 16], strides = [1, 1]} : vector<2x16xf32> to vector<1x16xf32>
    %38 = vector.broadcast %36 : vector<16x1xf32> to vector<16x16xf32>
    %39 = vector.broadcast %37 : vector<1x16xf32> to vector<16x16xf32>
    %40 = arith.addf %38, %39 : vector<16x16xf32>
    %cst_16 = arith.constant 2.000000e-01 : f32
    %41 = vector.broadcast %cst_16 : f32 to vector<16x16xf32>
    %42 = arith.mulf %41, %40 : vector<16x16xf32>
    %43 = arith.maximumf %40, %42 : vector<16x16xf32>
    %44 = arith.addf %43, %2 : vector<16x16xf32>
    %cst_17 = arith.constant dense<0xFF800000> : vector<16xf32>
    %45 = vector.multi_reduction <maximumf>, %44, %cst_17 [1] : vector<16x16xf32> to vector<16xf32>
    %46 = vector.shape_cast %45 : vector<16xf32> to vector<16x1xf32>
    %47 = vector.broadcast %46 : vector<16x1xf32> to vector<16x16xf32>
    %48 = arith.subf %44, %47 : vector<16x16xf32>
    %49 = math.exp %48 : vector<16x16xf32>
    %50 = vector.extract_strided_slice %9 {offsets = [0, 8], sizes = [16, 8], strides = [1, 1]} : vector<16x128xbf16> to vector<16x8xbf16>
    %51 = tpu.concatenate %50, %10 in 1 : vector<16x8xbf16>, vector<16x1xbf16> -> vector<16x9xbf16>
    %52 = arith.truncf %49 : vector<16x16xf32> to vector<16x16xbf16>
    %cst_18 = arith.constant dense<0.000000e+00> : vector<16x9xf32>
    %53 = tpu.matmul %52, %51, %cst_18 {dimension_numbers = #tpu.dot_dimension_numbers<[1], [0], [0], [1], [0, 0, 1, 1], [], []>} : vector<16x16xbf16>, vector<16x9xbf16>, vector<16x9xf32> -> vector<16x9xf32>
    %54 = vector.extract_strided_slice %53 {offsets = [0, 8], sizes = [16, 1], strides = [1, 1]} : vector<16x9xf32> to vector<16x1xf32>
    %cst_19 = arith.constant 9.99999968E-21 : f32
    %55 = vector.broadcast %cst_19 : f32 to vector<16x1xf32>
    %56 = arith.maximumf %54, %55 : vector<16x1xf32>
    %57 = vector.extract_strided_slice %53 {offsets = [0, 0], sizes = [16, 8], strides = [1, 1]} : vector<16x9xf32> to vector<16x8xf32>
    %58 = tpu.reciprocal %56 {approx = true} : vector<16x1xf32> -> vector<16x1xf32>
    %59 = vector.broadcast %58 : vector<16x1xf32> to vector<16x8xf32>
    %60 = arith.mulf %57, %59 : vector<16x8xf32>
    %cst_20 = arith.constant 0.000000e+00 : f32
    %61 = vector.broadcast %cst_20 : f32 to vector<16x112xf32>
    %62 = tpu.concatenate %35, %60, %61 in 1 : vector<16x8xf32>, vector<16x8xf32>, vector<16x112xf32> -> vector<16x128xf32>
    %c0_21 = arith.constant 0 : index
    %c0_22 = arith.constant 0 : index
    %63 = vector.load %arg6[%c0_21, %c0_22] : memref<1x128xf32, #tpu.memory_space<vmem>>, vector<1x128xf32>
    %64 = vector.broadcast %63 : vector<1x128xf32> to vector<16x128xf32>
    %65 = arith.addf %62, %64 : vector<16x128xf32>
    %c0_23 = arith.constant 0 : index
    %c0_24 = arith.constant 0 : index
    %66 = vector.load %arg7[%c0_23, %c0_24] : memref<16x128xf32, #tpu.memory_space<vmem>>, vector<16x128xf32>
    tpu.vector_store %arg7[%c0_23, %c0_24], %65 {strides = array<i32>} : memref<16x128xf32, #tpu.memory_space<vmem>>, vector<16x128xf32>,
    return
  }
  func.func @transform_0(%arg0: i32) -> (i32, i32) {
    %c0_i32 = arith.constant 0 : i32
    %c0_i32_0 = arith.constant 0 : i32
    return %arg0, %c0_i32 : i32, i32
  }
  func.func @transform_1(%arg0: i32) -> (i32, i32) {
    %c0_i32 = arith.constant 0 : i32
    %c0_i32_0 = arith.constant 0 : i32
    %c0_i32_1 = arith.constant 0 : i32
    return %c0_i32, %c0_i32_0 : i32, i32
  }
  func.func @transform_2(%arg0: i32) -> (i32, i32) {
    %c0_i32 = arith.constant 0 : i32
    %c0_i32_0 = arith.constant 0 : i32
    %c0_i32_1 = arith.constant 0 : i32
    return %c0_i32, %c0_i32_0 : i32, i32
  }
  func.func @transform_3(%arg0: i32) -> (i32, i32) {
    %c0_i32 = arith.constant 0 : i32
    %c0_i32_0 = arith.constant 0 : i32
    %c0_i32_1 = arith.constant 0 : i32
    return %c0_i32, %c0_i32_0 : i32, i32
  }
  func.func @transform_4(%arg0: i32) -> (i32, i32) {
    %c0_i32 = arith.constant 0 : i32
    %c0_i32_0 = arith.constant 0 : i32
    %c0_i32_1 = arith.constant 0 : i32
    return %c0_i32, %c0_i32_0 : i32, i32
  }
  func.func @transform_5(%arg0: i32) -> (i32, i32) {
    %c0_i32 = arith.constant 0 : i32
    %c0_i32_0 = arith.constant 0 : i32
    %c0_i32_1 = arith.constant 0 : i32
    return %c0_i32, %c0_i32_0 : i32, i32
  }
  func.func @transform_6(%arg0: i32) -> (i32, i32) {
    %c0_i32 = arith.constant 0 : i32
    %c0_i32_0 = arith.constant 0 : i32
    return %arg0, %c0_i32 : i32, i32
  }
}

</mosaic_0001>

<llo_original>
// kernel: tpu_custom_call.1
$region0: #{tpu_custom_call.1}
  #allocation0 [shape = 'u32[]', space=smem, size = 0x4, offset = 0x4, fixed_abs, tag = 'smem constant byte address 0x4 - core index']
  #allocation1 [shape = 'u32[72,128]{1,0:T(1,128)}', space=vmem, size = 0x9000, scoped, tag = 'internal scratch']
  %s0 = inlined_call_operand.hbm [shape: bf16[16,16], index: 0, kind: input, shape index: {}]
  %s1 = inlined_call_operand.hbm [shape: bf16[16,16], index: 1, kind: input, shape index: {}]
  %s2 = inlined_call_operand.hbm [shape: bf16[16,128], index: 2, kind: input, shape index: {}]
  %s3 = inlined_call_operand.vmem [shape: f32[2,128], index: 3, kind: input, shape index: {}]
  %s4 = inlined_call_operand.hbm [shape: f32[2,128], index: 4, kind: input, shape index: {}]
  %s5 = inlined_call_operand.vmem [shape: f32[1,128], index: 5, kind: input, shape index: {}]
  %s6 = inlined_call_operand.hbm [shape: f32[16,128], index: 6, kind: output, shape index: {}]
  %s7 = sld [smem:[#allocation0]]
  $region50: #{tpu_custom_call.1} parent=0
    _
  %s9 = ssub.s32 1, %s7
  %s10 = scalar_select 0, %s9, %s7
  $region1: #{tpu_custom_call.1} parent=0
    #allocation2 [shape = 'u8[4096]{0}', space=vmem, size = 0x1000, scoped, tag = 'input window, operand 0, single buffered']
    #allocation3 [shape = 's32[1]{0}', space=sflag, size = 0x4, scoped, tag = 'scoped memory for tpu_custom_call.1']
    #allocation4 [shape = 's32[1]{0}', space=sflag, size = 0x4, scoped, tag = 'scoped memory for tpu_custom_call.1']
    #allocation5 [shape = 'u8[4096]{0}', space=vmem, size = 0x1000, scoped, tag = 'input window, operand 1, single buffered']
    #allocation6 [shape = 's32[1]{0}', space=sflag, size = 0x4, scoped, tag = 'scoped memory for tpu_custom_call.1']
    #allocation7 [shape = 'u8[4096]{0}', space=vmem, size = 0x1000, scoped, tag = 'input window, operand 2, single buffered']
    #allocation8 [shape = 'u8[1024]{0}', space=vmem, size = 0x400, scoped, tag = 'input window, operand 4, single buffered']
    #allocation9 [shape = 's32[1]{0}', space=sflag, size = 0x4, scoped, tag = 'scoped memory for tpu_custom_call.1']
    #allocation10 [shape = 'u8[8192]{0}', space=vmem, size = 0x2000, scoped, tag = 'output window, operand 0, single buffered']
    %11 = vsyncpa [#allocation3], 0
    %12 = vsyncpa [#allocation6], 0
    %13 = vsyncpa [#allocation9], 0
    %14 = vsyncpa [#allocation4], 0
    // Predicated region
    $region2: #{tpu_custom_call.1} parent=1 // pred_check
      _
    $region3: #{tpu_custom_call.1} parent=1 // pred_check_branch
      %16 = sbr.rel (0) target = $region5
    $region4: #{tpu_custom_call.1} parent=1 // pred_region
      %18 = vsyncadd [#allocation3], 0
      %s19 = sshll.u32 %s0, 4
      %s20 = int_to_ptr.hbm [resolvable:$true] %s19
      %s21 = sshll.u32 [#allocation2], 4
      %s22 = int_to_ptr.vmem [resolvable:$true] %s21
      %27 = dma.hbm_to_vmem [thread:$0]  %s20, 128, %s22, [#allocation3], 64, 64, 4
    $region5: #{tpu_custom_call.1} parent=1 // pred_fallthru
      _
    // Predicated region
    $region6: #{tpu_custom_call.1} parent=1 // pred_check
      _
    $region7: #{tpu_custom_call.1} parent=1 // pred_check_branch
      %29 = sbr.rel (0) target = $region9
    $region8: #{tpu_custom_call.1} parent=1 // pred_region
      %31 = vsyncadd [#allocation6], 0
      %s32 = sshll.u32 %s1, 4
      %s33 = int_to_ptr.hbm [resolvable:$true] %s32
      %s34 = sshll.u32 [#allocation5], 4
      %s35 = int_to_ptr.vmem [resolvable:$true] %s34
      %40 = dma.hbm_to_vmem [thread:$0]  %s33, 128, %s35, [#allocation6], 64, 64, 4
    $region9: #{tpu_custom_call.1} parent=1 // pred_fallthru
      _
    // Predicated region
    $region10: #{tpu_custom_call.1} parent=1 // pred_check
      _
    $region11: #{tpu_custom_call.1} parent=1 // pred_check_branch
      %42 = sbr.rel (0) target = $region13
    $region12: #{tpu_custom_call.1} parent=1 // pred_region
      %44 = vsyncadd [#allocation6], 0
      %s45 = sshll.u32 %s2, 4
      %s46 = int_to_ptr.hbm [resolvable:$true] %s45
      %s47 = sshll.u32 [#allocation7], 4
      %s48 = int_to_ptr.vmem [resolvable:$true] %s47
      %53 = dma.hbm_to_vmem [thread:$0]  %s46, 128, %s48, [#allocation6], 64, 64, 4
    $region13: #{tpu_custom_call.1} parent=1 // pred_fallthru
      _
    // Predicated region
    $region14: #{tpu_custom_call.1} parent=1 // pred_check
      _
    $region15: #{tpu_custom_call.1} parent=1 // pred_check_branch
      %55 = sbr.rel (0) target = $region17
    $region16: #{tpu_custom_call.1} parent=1 // pred_region
      _
    $region17: #{tpu_custom_call.1} parent=1 // pred_fallthru
      _
    // Predicated region
    $region18: #{tpu_custom_call.1} parent=1 // pred_check
      _
    $region19: #{tpu_custom_call.1} parent=1 // pred_check_branch
      %57 = sbr.rel (0) target = $region21
    $region20: #{tpu_custom_call.1} parent=1 // pred_region
      %59 = vsyncadd [#allocation9], 0
      %s61 = sshll.u32 %s4, 4
      %s62 = int_to_ptr.hbm [resolvable:$true] %s61
      %s63 = sshll.u32 [#allocation8], 4
      %s64 = int_to_ptr.vmem [resolvable:$true] %s63
      %66 = dma.hbm_to_vmem [thread:$0]  %s62, 32, %s64, [#allocation9]
    $region21: #{tpu_custom_call.1} parent=1 // pred_fallthru
      _
    // Predicated region
    $region22: #{tpu_custom_call.1} parent=1 // pred_check
      _
    $region23: #{tpu_custom_call.1} parent=1 // pred_check_branch
      %68 = sbr.rel (0) target = $region25
    $region24: #{tpu_custom_call.1} parent=1 // pred_region
      _
    $region25: #{tpu_custom_call.1} parent=1 // pred_fallthru
      _
    // Predicated region
    $region26: #{tpu_custom_call.1} parent=1 // pred_check
      _
    $region27: #{tpu_custom_call.1} parent=1 // pred_check_branch
      %70 = sbr.rel (0) target = $region29
    $region28: #{tpu_custom_call.1} parent=1 // pred_region
      %72 = dma.done [#allocation3], 128
    $region29: #{tpu_custom_call.1} parent=1 // pred_fallthru
      _
    // Predicated region
    $region30: #{tpu_custom_call.1} parent=1 // pred_check
      _
    $region31: #{tpu_custom_call.1} parent=1 // pred_check_branch
      %74 = sbr.rel (0) target = $region33
    $region32: #{tpu_custom_call.1} parent=1 // pred_region
      %76 = dma.done [#allocation6], 128
    $region33: #{tpu_custom_call.1} parent=1 // pred_fallthru
      _
    // Predicated region
    $region34: #{tpu_custom_call.1} parent=1 // pred_check
      _
    $region35: #{tpu_custom_call.1} parent=1 // pred_check_branch
      %78 = sbr.rel (0) target = $region37
    $region36: #{tpu_custom_call.1} parent=1 // pred_region
      %80 = dma.done [#allocation6], 128
    $region37: #{tpu_custom_call.1} parent=1 // pred_fallthru
      _
    // Predicated region
    $region38: #{tpu_custom_call.1} parent=1 // pred_check
      _
    $region39: #{tpu_custom_call.1} parent=1 // pred_check_branch
      %82 = sbr.rel (0) target = $region41
    $region40: #{tpu_custom_call.1} parent=1 // pred_region
      %84 = dma.done [#allocation9], 32
    $region41: #{tpu_custom_call.1} parent=1 // pred_fallthru
      _
    %v87 = vld [vmem:[#allocation2] sm:$0xf]
    %v88 = vld [vmem:[#allocation2 + $0x4] sm:$0xf]
    %v89 = vld [vmem:[#allocation5] sm:$0xf]
    %v90 = vld [vmem:[#allocation5 + $0x4] sm:$0xf]
    %v91 = vunpack.c.l.bf16 %v89
    %v92 = vunpack.c.l.bf16 %v90
    %v93 = vld [vmem:[#allocation7] sm:$0xf]
    %v94 = vld [vmem:[#allocation7 + $0x4] sm:$0xf]
    %v97 = vunpack.c.l.b16 %v87
    %v98 = vunpack.c.l.b16 %v88
    %v99 = vpack.c.b16 %v98, %v97
    %v102 = vunpack.c.l.b16 %v93
    %v103 = vunpack.c.l.b16 %v94
    %v104 = vpack.c.b16 %v103, %v102
    %vm106 = vcmask 130048
    %v108 = vsel %vm106, %v99, 0
    %110 = vmatpush.bf16.msra.mxu0 0
    %111 = vmatpush.bf16.msra.mxu0 0
    %112 = vmatpush.bf16.msra.mxu0 0
    %113 = vmatpush.bf16.msra.mxu0 0
    %114 = vmatpush.bf16.msra.mxu0 0
    %115 = vmatpush.bf16.msra.mxu0 0
    %116 = vmatpush.bf16.msra.mxu0 0
    %117 = vmatpush.bf16.msra.mxu0 %v104
    %118 = vmatmul.bf16.gmra.mxu0 %v108
    %v119 = vpop.f32.mrf.mxu0
    %v120 = vadd.f32 0.0, %v119
    %v121 = vpop.f32.mrf.mxu0
    %v122 = vadd.f32 0.0, %v121
    %123 = vdwg.mxu0
    %v124 = vld [vmem:[%s3] sm:$0x3]
    %125 = vmatpush.xpose.msra.mxu0 0.0
    %126 = vmatpush.xpose.msra.mxu0 0.0
    %127 = vmatpush.xpose.msra.mxu0 0.0
    %128 = vmatpush.xpose.msra.mxu0 0.0
    %129 = vmatpush.xpose.msra.mxu0 0.0
    %130 = vmatpush.xpose.msra.mxu0 0.0
    %131 = vmatpush.xpose.msra.mxu0 0.0
    %132 = vmatpush.xpose.msra.mxu0 0.0
    %133 = vmatpush.xpose.msra.mxu0 0.0
    %134 = vmatpush.xpose.msra.mxu0 0.0
    %135 = vmatpush.xpose.msra.mxu0 0.0
    %136 = vmatpush.xpose.msra.mxu0 0.0
    %137 = vmatpush.xpose.msra.mxu0 0.0
    %138 = vmatpush.xpose.msra.mxu0 0.0
    %139 = vmatpush.xpose.msra.mxu0 %v122
    %140 = vmatpush.xpose.msra.mxu0 %v120
    %141 = vmatmul.f32.gmra.mxu0 %v124
    %v142 = vpop.f32.mrf.mxu0
    %v143 = vadd.f32 0.0, %v142
    %144 = vdwg.mxu0
    %v145 = vld [vmem:[#allocation8] sm:$0x3]
    %146 = vmatpush.xpose.msra.mxu0 0.0
    %147 = vmatpush.xpose.msra.mxu0 0.0
    %148 = vmatpush.xpose.msra.mxu0 0.0
    %149 = vmatpush.xpose.msra.mxu0 0.0
    %150 = vmatpush.xpose.msra.mxu0 0.0
    %151 = vmatpush.xpose.msra.mxu0 0.0
    %152 = vmatpush.xpose.msra.mxu0 0.0
    %153 = vmatpush.xpose.msra.mxu0 0.0
    %154 = vmatpush.xpose.msra.mxu0 0.0
    %155 = vmatpush.xpose.msra.mxu0 0.0
    %156 = vmatpush.xpose.msra.mxu0 0.0
    %157 = vmatpush.xpose.msra.mxu0 0.0
    %158 = vmatpush.xpose.msra.mxu0 0.0
    %159 = vmatpush.xpose.msra.mxu0 0.0
    %160 = vmatpush.xpose.msra.mxu0 0.0
    %161 = vmatpush.xpose.msra.mxu0 %v145
    %162 = vmatmul.f32.gmra.mxu0 %v120
    %v163 = vpop.f32.mrf.mxu0
    %v164 = vadd.f32 0.0, %v163
    %165 = vmatmul.f32.gmra.mxu0 %v122
    %v166 = vpop.f32.mrf.mxu0
    %v167 = vadd.f32 0.0, %v166
    %168 = vdwg.mxu0
    %v169 = vpack.c.bf16 %v120, %v120
    %v170 = vpack.c.bf16 %v122, %v122
    %172 = vset.pattern.permute.xlu0 0
    %173 = vperm.xlu0 %172, %v164
    %v174 = vpop.permute.xlu0 %173
    %177 = vset.pattern.permute.xlu0 0
    %178 = vperm.xlu0 %177, %v167
    %v179 = vpop.permute.xlu0 %178
    %v181 = vperm.slane %v143, 0
    %v182 = vadd.f32 %v174, %v181
    %v183 = vadd.f32 %v179, %v181
    %v184 = vmul.f32 %v182, 0.2
    %v185 = vmul.f32 %v183, 0.2
    %v186 = vmax.f32 %v182, %v184
    %v187 = vmax.f32 %v183, %v185
    %v188 = vadd.f32 %v186, %v91
    %v189 = vadd.f32 %v187, %v92
    %v190 = vsel %vm106, %v188, -inf
    %191 = vmax.xlane.f32.xlu0 %v190
    %v192 = vpop.xlane.xlu0 %191
    %v193 = vsel %vm106, %v189, -inf
    %194 = vmax.xlane.f32.xlu0 %v193
    %v195 = vpop.xlane.xlu0 %194
    %v196 = vsub.f32 %v188, %v192
    %v197 = vsub.f32 %v189, %v195
    %v198 = vmul.f32 %v196, 1.442695
    %v199 = vpow.pop %v198
    %v200 = vmul.f32 %v197, 1.442695
    %v201 = vpow.pop %v200
    %v204 = vunpack.c.l.b16 %v169
    %v205 = vunpack.c.l.b16 %v170
    %v206 = vpack.c.b16 %v205, %v204
    %vm207 = vcmask 64512
    %v210 = vsel %vm207, %v206, 1065369472
    %v212 = vpack.c.bf16 %v201, %v199
    %v214 = vsel %vm106, %v212, 0
    %216 = vmatpush.bf16.msra.mxu0 0
    %217 = vmatpush.bf16.msra.mxu0 0
    %218 = vmatpush.bf16.msra.mxu0 0
    %219 = vmatpush.bf16.msra.mxu0 0
    %220 = vmatpush.bf16.msra.mxu0 0
    %221 = vmatpush.bf16.msra.mxu0 0
    %222 = vmatpush.bf16.msra.mxu0 0
    %223 = vmatpush.bf16.msra.mxu0 %v210
    %224 = vmatmul.bf16.gmra.mxu0 %v214
    %v225 = vpop.f32.mrf.mxu0
    %v226 = vadd.f32 0.0, %v225
    %v227 = vpop.f32.mrf.mxu0
    %v228 = vadd.f32 0.0, %v227
    %229 = vdwg.mxu0
    %v230 = vmax.f32 %v226, 1e-20
    %v231 = vmax.f32 %v228, 1e-20
    %v232 = vrcp.pop %v230
    %v233 = vrcp.pop %v231
    %235 = vset.pattern.permute.xlu0 8
    %236 = vperm.xlu0 %235, %v232
    %v237 = vpop.permute.xlu0 %236
    %240 = vset.pattern.permute.xlu0 8
    %241 = vperm.xlu0 %240, %v233
    %v242 = vpop.permute.xlu0 %241
    %v244 = vmul.f32 %v226, %v237
    %v245 = vmul.f32 %v228, %v242
    %246 = vset.pattern.permute.xlu0 1
    %247 = vperm.xlu0 %246, %v164
    %v248 = vpop.permute.xlu0 %247
    %250 = vset.pattern.permute.xlu0 1
    %251 = vperm.xlu0 %250, %v167
    %v252 = vpop.permute.xlu0 %251
    %v254 = vperm.slane %v143, 1
    %v255 = vadd.f32 %v248, %v254
    %v256 = vadd.f32 %v252, %v254
    %v257 = vmul.f32 %v255, 0.2
    %v258 = vmul.f32 %v256, 0.2
    %v259 = vmax.f32 %v255, %v257
    %v260 = vmax.f32 %v256, %v258
    %v261 = vadd.f32 %v259, %v91
    %v262 = vadd.f32 %v260, %v92
    %v263 = vsel %vm106, %v261, -inf
    %264 = vmax.xlane.f32.xlu0 %v263
    %v265 = vpop.xlane.xlu0 %264
    %v266 = vsel %vm106, %v262, -inf
    %267 = vmax.xlane.f32.xlu0 %v266
    %v268 = vpop.xlane.xlu0 %267
    %v269 = vsub.f32 %v261, %v265
    %v270 = vsub.f32 %v262, %v268
    %v271 = vmul.f32 %v269, 1.442695
    %v272 = vpow.pop %v271
    %v273 = vmul.f32 %v270, 1.442695
    %v274 = vpow.pop %v273
    %275 = vrot.lane.b32.xlu0 %v206, 120
    %v276 = vpop.permute.xlu0 %275
    %v278 = vsel %vm207, %v276, 1065369472
    %v280 = vpack.c.bf16 %v274, %v272
    %v282 = vsel %vm106, %v280, 0
    %284 = vmatpush.bf16.msra.mxu0 0
    %285 = vmatpush.bf16.msra.mxu0 0
    %286 = vmatpush.bf16.msra.mxu0 0
    %287 = vmatpush.bf16.msra.mxu0 0
    %288 = vmatpush.bf16.msra.mxu0 0
    %289 = vmatpush.bf16.msra.mxu0 0
    %290 = vmatpush.bf16.msra.mxu0 0
    %291 = vmatpush.bf16.msra.mxu0 %v278
    %292 = vmatmul.bf16.gmra.mxu0 %v282
    %v293 = vpop.f32.mrf.mxu0
    %v294 = vadd.f32 0.0, %v293
    %v295 = vpop.f32.mrf.mxu0
    %v296 = vadd.f32 0.0, %v295
    %297 = vdwg.mxu0
    %v298 = vmax.f32 %v294, 1e-20
    %v299 = vmax.f32 %v296, 1e-20
    %v300 = vrcp.pop %v298
    %v301 = vrcp.pop %v299
    %303 = vset.pattern.permute.xlu0 8
    %304 = vperm.xlu0 %303, %v300
    %v305 = vpop.permute.xlu0 %304
    %308 = vset.pattern.permute.xlu0 8
    %309 = vperm.xlu0 %308, %v301
    %v310 = vpop.permute.xlu0 %309
    %v312 = vmul.f32 %v294, %v305
    %v313 = vmul.f32 %v296, %v310
    %316 = vrot.lane.b32.xlu0 %v312, 8
    %v317 = vpop.permute.xlu0 %316
    %318 = vrot.lane.b32.xlu0 %v313, 8
    %v319 = vpop.permute.xlu0 %318
    %v322 = vsel %vm207, %v244, %v317
    %v323 = vsel %vm207, %v245, %v319
    %v324 = vsel %vm106, %v322, 0.0
    %v325 = vsel %vm106, %v323, 0.0
    %v326 = vld [vmem:[%s5] sm:$0x1]
    %v328 = vperm.slane %v326, 0
    %v330 = vadd.f32 %v324, %v328
    %v331 = vadd.f32 %v325, %v328
    %332 = vst [vmem:[#allocation10] sm:$0xff] %v330
    %333 = vst [vmem:[#allocation10 + $0x8] sm:$0xff] %v331
    // Predicated region
    $region42: #{tpu_custom_call.1} parent=1 // pred_check
      _
    $region43: #{tpu_custom_call.1} parent=1 // pred_check_branch
      %335 = sbr.rel (0) target = $region45
    $region44: #{tpu_custom_call.1} parent=1 // pred_region
      %337 = vsyncadd [#allocation4], 0
      %s338 = sshll.u32 [#allocation10], 4
      %s339 = int_to_ptr.vmem [resolvable:$true] %s338
      %s340 = sshll.u32 %s6, 4
      %s341 = int_to_ptr.hbm [resolvable:$true] %s340
      %346 = dma.vmem_to_hbm [thread:$0]  %s339, 256, %s341, [#allocation4], 128, 128, 8
    $region45: #{tpu_custom_call.1} parent=1 // pred_fallthru
      _
    // Predicated region
    $region46: #{tpu_custom_call.1} parent=1 // pred_check
      _
    $region47: #{tpu_custom_call.1} parent=1 // pred_check_branch
      %348 = sbr.rel (0) target = $region49
    $region48: #{tpu_custom_call.1} parent=1 // pred_region
      %350 = dma.done [#allocation4], 256
    $region49: #{tpu_custom_call.1} parent=1 // pred_fallthru
      _
    %351 = vsyncpa [#allocation3], 1
    %352 = vsyncpa [#allocation6], 1
    %353 = vsyncpa [#allocation9], 1
    %354 = vsyncpa [#allocation4], 1

// kernel: tpu_custom_call.1
$region0: #{tpu_custom_call.1}
  #allocation0 [shape = 'u32[]', space=smem, size = 0x4, offset = 0x4, fixed_abs, tag = 'smem constant byte address 0x4 - core index']
  #allocation1 [shape = 'u32[72,128]{1,0:T(1,128)}', space=vmem, size = 0x9000, scoped, tag = 'internal scratch']
  %s0 = inlined_call_operand.hbm [shape: bf16[16,16], index: 0, kind: input, shape index: {}]
  %s1 = inlined_call_operand.hbm [shape: bf16[16,16], index: 1, kind: input, shape index: {}]
  %s2 = inlined_call_operand.hbm [shape: bf16[16,128], index: 2, kind: input, shape index: {}]
  %s3 = inlined_call_operand.vmem [shape: f32[2,128], index: 3, kind: input, shape index: {}]
  %s4 = inlined_call_operand.hbm [shape: f32[2,128], index: 4, kind: input, shape index: {}]
  %s5 = inlined_call_operand.vmem [shape: f32[1,128], index: 5, kind: input, shape index: {}]
  %s6 = inlined_call_operand.hbm [shape: f32[16,128], index: 6, kind: output, shape index: {}]
  %s7 = sld [smem:[#allocation0]]
  $region50: #{tpu_custom_call.1} parent=0
    _
  %s9 = ssub.s32 1, %s7
  %s10 = scalar_select 0, %s9, %s7
  $region1: #{tpu_custom_call.1} parent=0
    #allocation2 [shape = 'u8[4096]{0}', space=vmem, size = 0x1000, scoped, tag = 'input window, operand 0, single buffered']
    #allocation3 [shape = 's32[1]{0}', space=sflag, size = 0x4, scoped, tag = 'scoped memory for tpu_custom_call.1']
    #allocation4 [shape = 's32[1]{0}', space=sflag, size = 0x4, scoped, tag = 'scoped memory for tpu_custom_call.1']
    #allocation5 [shape = 'u8[4096]{0}', space=vmem, size = 0x1000, scoped, tag = 'input window, operand 1, single buffered']
    #allocation6 [shape = 's32[1]{0}', space=sflag, size = 0x4, scoped, tag = 'scoped memory for tpu_custom_call.1']
    #allocation7 [shape = 'u8[4096]{0}', space=vmem, size = 0x1000, scoped, tag = 'input window, operand 2, single buffered']
    #allocation8 [shape = 'u8[1024]{0}', space=vmem, size = 0x400, scoped, tag = 'input window, operand 4, single buffered']
    #allocation9 [shape = 's32[1]{0}', space=sflag, size = 0x4, scoped, tag = 'scoped memory for tpu_custom_call.1']
    #allocation10 [shape = 'u8[8192]{0}', space=vmem, size = 0x2000, scoped, tag = 'output window, operand 0, single buffered']
    %11 = vsyncpa [#allocation3], 0
    %12 = vsyncpa [#allocation6], 0
    %13 = vsyncpa [#allocation9], 0
    %14 = vsyncpa [#allocation4], 0
    // Predicated region
    $region2: #{tpu_custom_call.1} parent=1 // pred_check
      _
    $region3: #{tpu_custom_call.1} parent=1 // pred_check_branch
      %16 = sbr.rel (0) target = $region5
    $region4: #{tpu_custom_call.1} parent=1 // pred_region
      %18 = vsyncadd [#allocation3], 0
      %s19 = sshll.u32 %s0, 4
      %s20 = int_to_ptr.hbm [resolvable:$true] %s19
      %s21 = sshll.u32 [#allocation2], 4
      %s22 = int_to_ptr.vmem [resolvable:$true] %s21
      %27 = dma.hbm_to_vmem [thread:$0]  %s20, 128, %s22, [#allocation3], 64, 64, 4
    $region5: #{tpu_custom_call.1} parent=1 // pred_fallthru
      _
    // Predicated region
    $region6: #{tpu_custom_call.1} parent=1 // pred_check
      _
    $region7: #{tpu_custom_call.1} parent=1 // pred_check_branch
      %29 = sbr.rel (0) target = $region9
    $region8: #{tpu_custom_call.1} parent=1 // pred_region
      %31 = vsyncadd [#allocation6], 0
      %s32 = sshll.u32 %s1, 4
      %s33 = int_to_ptr.hbm [resolvable:$true] %s32
      %s34 = sshll.u32 [#allocation5], 4
      %s35 = int_to_ptr.vmem [resolvable:$true] %s34
      %40 = dma.hbm_to_vmem [thread:$0]  %s33, 128, %s35, [#allocation6], 64, 64, 4
    $region9: #{tpu_custom_call.1} parent=1 // pred_fallthru
      _
    // Predicated region
    $region10: #{tpu_custom_call.1} parent=1 // pred_check
      _
    $region11: #{tpu_custom_call.1} parent=1 // pred_check_branch
      %42 = sbr.rel (0) target = $region13
    $region12: #{tpu_custom_call.1} parent=1 // pred_region
      %44 = vsyncadd [#allocation6], 0
      %s45 = sshll.u32 %s2, 4
      %s46 = int_to_ptr.hbm [resolvable:$true] %s45
      %s47 = sshll.u32 [#allocation7], 4
      %s48 = int_to_ptr.vmem [resolvable:$true] %s47
      %53 = dma.hbm_to_vmem [thread:$0]  %s46, 128, %s48, [#allocation6], 64, 64, 4
    $region13: #{tpu_custom_call.1} parent=1 // pred_fallthru
      _
    // Predicated region
    $region14: #{tpu_custom_call.1} parent=1 // pred_check
      _
    $region15: #{tpu_custom_call.1} parent=1 // pred_check_branch
      %55 = sbr.rel (0) target = $region17
    $region16: #{tpu_custom_call.1} parent=1 // pred_region
      _
    $region17: #{tpu_custom_call.1} parent=1 // pred_fallthru
      _
    // Predicated region
    $region18: #{tpu_custom_call.1} parent=1 // pred_check
      _
    $region19: #{tpu_custom_call.1} parent=1 // pred_check_branch
      %57 = sbr.rel (0) target = $region21
    $region20: #{tpu_custom_call.1} parent=1 // pred_region
      %59 = vsyncadd [#allocation9], 0
      %s61 = sshll.u32 %s4, 4
      %s62 = int_to_ptr.hbm [resolvable:$true] %s61
      %s63 = sshll.u32 [#allocation8], 4
      %s64 = int_to_ptr.vmem [resolvable:$true] %s63
      %66 = dma.hbm_to_vmem [thread:$0]  %s62, 32, %s64, [#allocation9]
    $region21: #{tpu_custom_call.1} parent=1 // pred_fallthru
      _
    // Predicated region
    $region22: #{tpu_custom_call.1} parent=1 // pred_check
      _
    $region23: #{tpu_custom_call.1} parent=1 // pred_check_branch
      %68 = sbr.rel (0) target = $region25
    $region24: #{tpu_custom_call.1} parent=1 // pred_region
      _
    $region25: #{tpu_custom_call.1} parent=1 // pred_fallthru
      _
    // Predicated region
    $region26: #{tpu_custom_call.1} parent=1 // pred_check
      _
    $region27: #{tpu_custom_call.1} parent=1 // pred_check_branch
      %70 = sbr.rel (0) target = $region29
    $region28: #{tpu_custom_call.1} parent=1 // pred_region
      %72 = dma.done [#allocation3], 128
    $region29: #{tpu_custom_call.1} parent=1 // pred_fallthru
      _
    // Predicated region
    $region30: #{tpu_custom_call.1} parent=1 // pred_check
      _
    $region31: #{tpu_custom_call.1} parent=1 // pred_check_branch
      %74 = sbr.rel (0) target = $region33
    $region32: #{tpu_custom_call.1} parent=1 // pred_region
      %76 = dma.done [#allocation6], 128
    $region33: #{tpu_custom_call.1} parent=1 // pred_fallthru
      _
    // Predicated region
    $region34: #{tpu_custom_call.1} parent=1 // pred_check
      _
    $region35: #{tpu_custom_call.1} parent=1 // pred_check_branch
      %78 = sbr.rel (0) target = $region37
    $region36: #{tpu_custom_call.1} parent=1 // pred_region
      %80 = dma.done [#allocation6], 128
    $region37: #{tpu_custom_call.1} parent=1 // pred_fallthru
      _
    // Predicated region
    $region38: #{tpu_custom_call.1} parent=1 // pred_check
      _
    $region39: #{tpu_custom_call.1} parent=1 // pred_check_branch
      %82 = sbr.rel (0) target = $region41
    $region40: #{tpu_custom_call.1} parent=1 // pred_region
      %84 = dma.done [#allocation9], 32
    $region41: #{tpu_custom_call.1} parent=1 // pred_fallthru
      _
    %v87 = vld [vmem:[#allocation2] sm:$0xf]
    %v88 = vld [vmem:[#allocation2 + $0x4] sm:$0xf]
    %v89 = vld [vmem:[#allocation5] sm:$0xf]
    %v90 = vld [vmem:[#allocation5 + $0x4] sm:$0xf]
    %v91 = vunpack.c.l.bf16 %v89
    %v92 = vunpack.c.l.bf16 %v90
    %v93 = vld [vmem:[#allocation7] sm:$0xf]
    %v94 = vld [vmem:[#allocation7 + $0x4] sm:$0xf]
    %v97 = vunpack.c.l.b16 %v87
    %v98 = vunpack.c.l.b16 %v88
    %v99 = vpack.c.b16 %v98, %v97
    %v102 = vunpack.c.l.b16 %v93
    %v103 = vunpack.c.l.b16 %v94
    %v104 = vpack.c.b16 %v103, %v102
    %vm106 = vcmask 130048
    %v108 = vsel %vm106, %v99, 0
    %110 = vmatpush.bf16.msra.mxu0 0
    %111 = vmatpush.bf16.msra.mxu0 0
    %112 = vmatpush.bf16.msra.mxu0 0
    %113 = vmatpush.bf16.msra.mxu0 0
    %114 = vmatpush.bf16.msra.mxu0 0
    %115 = vmatpush.bf16.msra.mxu0 0
    %116 = vmatpush.bf16.msra.mxu0 0
    %117 = vmatpush.bf16.msra.mxu0 %v104
    %118 = vmatmul.bf16.gmra.mxu0 %v108
    %v119 = vpop.f32.mrf.mxu0
    %v120 = vadd.f32 0.0, %v119
    %v121 = vpop.f32.mrf.mxu0
    %v122 = vadd.f32 0.0, %v121
    %123 = vdwg.mxu0
    %v124 = vld [vmem:[%s3] sm:$0x3]
    %125 = vmatpush.xpose.msra.mxu0 0.0
    %126 = vmatpush.xpose.msra.mxu0 0.0
    %127 = vmatpush.xpose.msra.mxu0 0.0
    %128 = vmatpush.xpose.msra.mxu0 0.0
    %129 = vmatpush.xpose.msra.mxu0 0.0
    %130 = vmatpush.xpose.msra.mxu0 0.0
    %131 = vmatpush.xpose.msra.mxu0 0.0
    %132 = vmatpush.xpose.msra.mxu0 0.0
    %133 = vmatpush.xpose.msra.mxu0 0.0
    %134 = vmatpush.xpose.msra.mxu0 0.0
    %135 = vmatpush.xpose.msra.mxu0 0.0
    %136 = vmatpush.xpose.msra.mxu0 0.0
    %137 = vmatpush.xpose.msra.mxu0 0.0
    %138 = vmatpush.xpose.msra.mxu0 0.0
    %139 = vmatpush.xpose.msra.mxu0 %v122
    %140 = vmatpush.xpose.msra.mxu0 %v120
    %141 = vmatmul.f32.gmra.mxu0 %v124
    %v142 = vpop.f32.mrf.mxu0
    %v143 = vadd.f32 0.0, %v142
    %144 = vdwg.mxu0
    %v145 = vld [vmem:[#allocation8] sm:$0x3]
    %146 = vmatpush.xpose.msra.mxu0 0.0
    %147 = vmatpush.xpose.msra.mxu0 0.0
    %148 = vmatpush.xpose.msra.mxu0 0.0
    %149 = vmatpush.xpose.msra.mxu0 0.0
    %150 = vmatpush.xpose.msra.mxu0 0.0
    %151 = vmatpush.xpose.msra.mxu0 0.0
    %152 = vmatpush.xpose.msra.mxu0 0.0
    %153 = vmatpush.xpose.msra.mxu0 0.0
    %154 = vmatpush.xpose.msra.mxu0 0.0
    %155 = vmatpush.xpose.msra.mxu0 0.0
    %156 = vmatpush.xpose.msra.mxu0 0.0
    %157 = vmatpush.xpose.msra.mxu0 0.0
    %158 = vmatpush.xpose.msra.mxu0 0.0
    %159 = vmatpush.xpose.msra.mxu0 0.0
    %160 = vmatpush.xpose.msra.mxu0 0.0
    %161 = vmatpush.xpose.msra.mxu0 %v145
    %162 = vmatmul.f32.gmra.mxu0 %v120
    %v163 = vpop.f32.mrf.mxu0
    %v164 = vadd.f32 0.0, %v163
    %165 = vmatmul.f32.gmra.mxu0 %v122
    %v166 = vpop.f32.mrf.mxu0
    %v167 = vadd.f32 0.0, %v166
    %168 = vdwg.mxu0
    %v169 = vpack.c.bf16 %v120, %v120
    %v170 = vpack.c.bf16 %v122, %v122
    %172 = vset.pattern.permute.xlu0 0
    %173 = vperm.xlu0 %172, %v164
    %v174 = vpop.permute.xlu0 %173
    %177 = vset.pattern.permute.xlu0 0
    %178 = vperm.xlu0 %177, %v167
    %v179 = vpop.permute.xlu0 %178
    %v181 = vperm.slane %v143, 0
    %v182 = vadd.f32 %v174, %v181
    %v183 = vadd.f32 %v179, %v181
    %v184 = vmul.f32 %v182, 0.2
    %v185 = vmul.f32 %v183, 0.2
    %v186 = vmax.f32 %v182, %v184
    %v187 = vmax.f32 %v183, %v185
    %v188 = vadd.f32 %v186, %v91
    %v189 = vadd.f32 %v187, %v92
    %v190 = vsel %vm106, %v188, -inf
    %191 = vmax.xlane.f32.xlu0 %v190
    %v192 = vpop.xlane.xlu0 %191
    %v193 = vsel %vm106, %v189, -inf
    %194 = vmax.xlane.f32.xlu0 %v193
    %v195 = vpop.xlane.xlu0 %194
    %v196 = vsub.f32 %v188, %v192
    %v197 = vsub.f32 %v189, %v195
    %v198 = vmul.f32 %v196, 1.442695
    %v199 = vpow.pop %v198
    %v200 = vmul.f32 %v197, 1.442695
    %v201 = vpow.pop %v200
    %v204 = vunpack.c.l.b16 %v169
    %v205 = vunpack.c.l.b16 %v170
    %v206 = vpack.c.b16 %v205, %v204
    %vm207 = vcmask 64512
    %v210 = vsel %vm207, %v206, 1065369472
    %v212 = vpack.c.bf16 %v201, %v199
    %v214 = vsel %vm106, %v212, 0
    %216 = vmatpush.bf16.msra.mxu0 0
    %217 = vmatpush.bf16.msra.mxu0 0
    %218 = vmatpush.bf16.msra.mxu0 0
    %219 = vmatpush.bf16.msra.mxu0 0
    %220 = vmatpush.bf16.msra.mxu0 0
    %221 = vmatpush.bf16.msra.mxu0 0
    %222 = vmatpush.bf16.msra.mxu0 0
    %223 = vmatpush.bf16.msra.mxu0 %v210
    %224 = vmatmul.bf16.gmra.mxu0 %v214
    %v225 = vpop.f32.mrf.mxu0
    %v226 = vadd.f32 0.0, %v225
    %v227 = vpop.f32.mrf.mxu0
    %v228 = vadd.f32 0.0, %v227
    %229 = vdwg.mxu0
    %v230 = vmax.f32 %v226, 1e-20
    %v231 = vmax.f32 %v228, 1e-20
    %v232 = vrcp.pop %v230
    %v233 = vrcp.pop %v231
    %235 = vset.pattern.permute.xlu0 8
    %236 = vperm.xlu0 %235, %v232
    %v237 = vpop.permute.xlu0 %236
    %240 = vset.pattern.permute.xlu0 8
    %241 = vperm.xlu0 %240, %v233
    %v242 = vpop.permute.xlu0 %241
    %v244 = vmul.f32 %v226, %v237
    %v245 = vmul.f32 %v228, %v242
    %246 = vset.pattern.permute.xlu0 1
    %247 = vperm.xlu0 %246, %v164
    %v248 = vpop.permute.xlu0 %247
    %250 = vset.pattern.permute.xlu0 1
    %251 = vperm.xlu0 %250, %v167
    %v252 = vpop.permute.xlu0 %251
    %v254 = vperm.slane %v143, 1
    %v255 = vadd.f32 %v248, %v254
    %v256 = vadd.f32 %v252, %v254
    %v257 = vmul.f32 %v255, 0.2
    %v258 = vmul.f32 %v256, 0.2
    %v259 = vmax.f32 %v255, %v257
    %v260 = vmax.f32 %v256, %v258
    %v261 = vadd.f32 %v259, %v91
    %v262 = vadd.f32 %v260, %v92
    %v263 = vsel %vm106, %v261, -inf
    %264 = vmax.xlane.f32.xlu0 %v263
    %v265 = vpop.xlane.xlu0 %264
    %v266 = vsel %vm106, %v262, -inf
    %267 = vmax.xlane.f32.xlu0 %v266
    %v268 = vpop.xlane.xlu0 %267
    %v269 = vsub.f32 %v261, %v265
    %v270 = vsub.f32 %v262, %v268
    %v271 = vmul.f32 %v269, 1.442695
    %v272 = vpow.pop %v271
    %v273 = vmul.f32 %v270, 1.442695
    %v274 = vpow.pop %v273
    %275 = vrot.lane.b32.xlu0 %v206, 120
    %v276 = vpop.permute.xlu0 %275
    %v278 = vsel %vm207, %v276, 1065369472
    %v280 = vpack.c.bf16 %v274, %v272
    %v282 = vsel %vm106, %v280, 0
    %284 = vmatpush.bf16.msra.mxu0 0
    %285 = vmatpush.bf16.msra.mxu0 0
    %286 = vmatpush.bf16.msra.mxu0 0
    %287 = vmatpush.bf16.msra.mxu0 0
    %288 = vmatpush.bf16.msra.mxu0 0
    %289 = vmatpush.bf16.msra.mxu0 0
    %290 = vmatpush.bf16.msra.mxu0 0
    %291 = vmatpush.bf16.msra.mxu0 %v278
    %292 = vmatmul.bf16.gmra.mxu0 %v282
    %v293 = vpop.f32.mrf.mxu0
    %v294 = vadd.f32 0.0, %v293
    %v295 = vpop.f32.mrf.mxu0
    %v296 = vadd.f32 0.0, %v295
    %297 = vdwg.mxu0
    %v298 = vmax.f32 %v294, 1e-20
    %v299 = vmax.f32 %v296, 1e-20
    %v300 = vrcp.pop %v298
    %v301 = vrcp.pop %v299
    %303 = vset.pattern.permute.xlu0 8
    %304 = vperm.xlu0 %303, %v300
    %v305 = vpop.permute.xlu0 %304
    %308 = vset.pattern.permute.xlu0 8
    %309 = vperm.xlu0 %308, %v301
    %v310 = vpop.permute.xlu0 %309
    %v312 = vmul.f32 %v294, %v305
    %v313 = vmul.f32 %v296, %v310
    %316 = vrot.lane.b32.xlu0 %v312, 8
    %v317 = vpop.permute.xlu0 %316
    %318 = vrot.lane.b32.xlu0 %v313, 8
    %v319 = vpop.permute.xlu0 %318
    %v322 = vsel %vm207, %v244, %v317
    %v323 = vsel %vm207, %v245, %v319
    %v324 = vsel %vm106, %v322, 0.0
    %v325 = vsel %vm106, %v323, 0.0
    %v326 = vld [vmem:[%s5] sm:$0x1]
    %v328 = vperm.slane %v326, 0
    %v330 = vadd.f32 %v324, %v328
    %v331 = vadd.f32 %v325, %v328
    %332 = vst [vmem:[#allocation10] sm:$0xff] %v330
    %333 = vst [vmem:[#allocation10 + $0x8] sm:$0xff] %v331
    // Predicated region
    $region42: #{tpu_custom_call.1} parent=1 // pred_check
      _
    $region43: #{tpu_custom_call.1} parent=1 // pred_check_branch
      %335 = sbr.rel (0) target = $region45
    $region44: #{tpu_custom_call.1} parent=1 // pred_region
      %337 = vsyncadd [#allocation4], 0
      %s338 = sshll.u32 [#allocation10], 4
      %s339 = int_to_ptr.vmem [resolvable:$true] %s338
      %s340 = sshll.u32 %s6, 4
      %s341 = int_to_ptr.hbm [resolvable:$true] %s340
      %346 = dma.vmem_to_hbm [thread:$0]  %s339, 256, %s341, [#allocation4], 128, 128, 8
    $region45: #{tpu_custom_call.1} parent=1 // pred_fallthru
      _
    // Predicated region
    $region46: #{tpu_custom_call.1} parent=1 // pred_check
      _
    $region47: #{tpu_custom_call.1} parent=1 // pred_check_branch
      %348 = sbr.rel (0) target = $region49
    $region48: #{tpu_custom_call.1} parent=1 // pred_region
      %350 = dma.done [#allocation4], 256
    $region49: #{tpu_custom_call.1} parent=1 // pred_fallthru
      _
    %351 = vsyncpa [#allocation3], 1
    %352 = vsyncpa [#allocation6], 1
    %353 = vsyncpa [#allocation9], 1
    %354 = vsyncpa [#allocation4], 1

</llo_original>
